<compile_context>
chip_gen: v7x
topology: tpu7x:2x2x1
jax: 0.10.0
libtpu: 0.0.40
codegen_flags: <defaults>
</compile_context>

<pallas_src>
import functools

import jax
import jax.numpy as jnp
from jax.experimental import pallas as pl
from jax.experimental.pallas import tpu as pltpu

_MAX_LANES = 32768  # lanes per grid step; f32 y_pred block <= ~2 MiB (9->16 sublanes)


def _group_mse_kernel(yp_ref, yt_ref, o_ref, *, mode, n_valid, n_total):
    # yp_ref: (G, L) block  -- group axis on sublanes, batch*class on lanes.
    # yt_ref: (1, L) block  -- raw targets (rescale folded out).
    # o_ref : (1, 128) block -- partial sum of squared diffs in lane 0.
    x = yp_ref[...].astype(jnp.float32)                        # (G, L)
    G, L = x.shape

    if mode == "top":
        # argmax over the group axis of raw logits == argmax of the softmax
        # (exp is monotone, per-column normalization preserves order).
        mx = jnp.max(x, axis=0, keepdims=True)                 # (1, L)
        gi = jax.lax.broadcasted_iota(jnp.int32, (G, 1), 0)    # group index column
        first_idx = jnp.min(jnp.where(x == mx, gi, G), axis=0, keepdims=True)
        raw = first_idx.astype(jnp.float32)                    # (1, L)
    elif mode == "weighted_avg":
        # Stable softmax with deferred normalization:
        #   sum_g softmax(x)_g * (1 + 0.5*g) == 1 + 0.5 * (sum(e*g) / sum(e))
        m = jnp.max(x, axis=0, keepdims=True)
        e = jnp.exp(x - m)                                     # (G, L)
        g = jax.lax.broadcasted_iota(jnp.float32, (G, 1), 0)   # group index column
        num = jnp.sum(e * g, axis=0, keepdims=True)            # (1, L)
        den = jnp.sum(e, axis=0, keepdims=True)                # (1, L)
        raw = num / den                                        # (1, L)
    else:
        raise ValueError(f"unknown mode: {mode}")

    # (raw*0.5 + 1) - (yt*0.5 + 1) == 0.5*(raw - yt); the 0.25 and the /(B*C)
    # of the mean reduction are applied once, outside the kernel.
    diff = raw - yt_ref[...].astype(jnp.float32)               # (1, L)
    sq = diff * diff

    if n_valid != n_total:
        # mask zero-padded tail lanes of the (batch*class) axis
        col = jax.lax.broadcasted_iota(jnp.int32, (1, L), 1) + pl.program_id(0) * L
        sq = jnp.where(col < n_valid, sq, 0.0)

    partial = jnp.sum(sq)                                      # scalar
    lane = jax.lax.broadcasted_iota(jnp.int32, (1, 128), 1)
    o_ref[...] = jnp.where(lane == 0, partial, 0.0)            # lane-dense scalar slot


@functools.partial(
    jax.jit, static_argnames=("num_classes_in_group", "num_classes", "mode")
)
def group_mse(y_pred, y_true, *, num_classes_in_group, num_classes, mode="top"):
    B = y_pred.shape[0]
    G, C = num_classes_in_group, num_classes
    if mode == "weighted_avg" and G != 9:
        # torch.arange(1.0, 5.5, 0.5) has 9 entries -> broadcast requires G == 9
        raise ValueError("weighted_avg mode requires num_classes_in_group == 9")

    n = B * C
    # Lane-dense relayout (layout plumbing only, done in XLA):
    #   (B, G*C) -> (B, G, C) -> (G, B, C) -> (G, B*C)
    yp = jnp.transpose(y_pred.reshape(B, G, C), (1, 0, 2)).reshape(G, n)
    yt = y_true.reshape(1, n).astype(jnp.float32)

    # Pad the lane axis to a multiple of 128 and tile it at <= _MAX_LANES lanes.
    n128 = ((n + 127) // 128) * 128
    lanes = min(_MAX_LANES, n128)
    num_tiles = (n + lanes - 1) // lanes
    n_pad = num_tiles * lanes
    if n_pad != n:
        yp = jnp.pad(yp, ((0, 0), (0, n_pad - n)))
        yt = jnp.pad(yt, ((0, 0), (0, n_pad - n)))

    kernel = functools.partial(_group_mse_kernel, mode=mode, n_valid=n, n_total=n_pad)

    partials = pl.pallas_call(
        kernel,
        out_shape=jax.ShapeDtypeStruct((1, num_tiles * 128), jnp.float32),
        grid_spec=pltpu.PrefetchScalarGridSpec(
            num_scalar_prefetch=0,
            grid=(num_tiles,),
            in_specs=[
                pl.BlockSpec((G, lanes), lambda i: (0, i)),   # y_pred (G, n_pad)
                pl.BlockSpec((1, lanes), lambda i: (0, i)),   # y_true (1, n_pad)
            ],
            out_specs=pl.BlockSpec((1, 128), lambda i: (0, i)),
        ),
        compiler_params=pltpu.CompilerParams(
            dimension_semantics=("parallel",),   # independent tiles -> megacore OK
        ),
    )(yp, yt)

    # Folded affine rescales (0.25) and the MSE 'mean' normalization (1/(B*C)).
    return 0.25 * jnp.sum(partials) / n


def _reference(y_pred, y_true, G, C, mode):
    B = y_pred.shape[0]
    yp = y_pred.reshape(B, G, C)
    sm = jax.nn.softmax(yp, axis=1)
    if mode == "top":
        vals = jnp.argmax(sm, axis=1).astype(jnp.float32) * 0.5 + 1.0
    else:
        gv = jnp.arange(1.0, 5.5, 0.5)
        vals = jnp.sum(sm * gv[None, :, None], axis=1)
    yt = y_true * 0.5 + 1.0
    return jnp.mean((vals - yt) ** 2)


if __name__ == "__main__":
    key = jax.random.PRNGKey(0)

    # Case 1: module's shipped sizes -- G=9 (arange(1.0,5.5,0.5)), C=16, B=8.
    B, G, C = 8, 9, 16
    k1, k2, k3, k4 = jax.random.split(key, 4)
    y_pred = jax.random.normal(k1, (B, G * C), dtype=jnp.float32)
    y_true = jax.random.randint(k2, (B, C), 0, G).astype(jnp.float32)

    loss_top = group_mse(y_pred, y_true, num_classes_in_group=G, num_classes=C,
                         mode="top")
    loss_wavg = group_mse(y_pred, y_true, num_classes_in_group=G, num_classes=C,
                          mode="weighted_avg")
    jax.block_until_ready((loss_top, loss_wavg))

    assert jnp.allclose(loss_top, _reference(y_pred, y_true, G, C, "top"),
                        atol=1e-5, rtol=1e-5)
    assert jnp.allclose(loss_wavg, _reference(y_pred, y_true, G, C, "weighted_avg"),
                        atol=1e-5, rtol=1e-5)

    # Case 2: non-multiple-of-128 B*C to exercise the lane-padding mask.
    B2, C2 = 5, 7
    y_pred2 = jax.random.normal(k3, (B2, G * C2), dtype=jnp.float32)
    y_true2 = jax.random.randint(k4, (B2, C2), 0, G).astype(jnp.float32)
    loss2_top = group_mse(y_pred2, y_true2, num_classes_in_group=G,
                          num_classes=C2, mode="top")
    loss2_wavg = group_mse(y_pred2, y_true2, num_classes_in_group=G,
                           num_classes=C2, mode="weighted_avg")
    jax.block_until_ready((loss2_top, loss2_wavg))

    assert jnp.allclose(loss2_top, _reference(y_pred2, y_true2, G, C2, "top"),
                        atol=1e-5, rtol=1e-5)
    assert jnp.allclose(loss2_wavg, _reference(y_pred2, y_true2, G, C2, "weighted_avg"),
                        atol=1e-5, rtol=1e-5)

    print("KERNEL_OK")
</pallas_src>

<mosaic_0001>
module attributes {stable_mosaic.version = 11 : i64} {
  func.func @_group_mse_kernel(%arg0: i32, %arg1: memref<9x128xf32, #tpu.memory_space<vmem>>, %arg2: memref<1x128xf32, #tpu.memory_space<vmem>>, %arg3: memref<1x128xf32, #tpu.memory_space<vmem>>) attributes {dimension_semantics = [#tpu.dimension_semantics<parallel>], iteration_bounds = array<i64: 1>, scalar_prefetch = 0 : i64, scratch_operands = 0 : i64, tpu.core_type = #tpu.core_type<tc>, window_params = [{transform_indices = @transform_0, window_bounds = array<i64: 9, 128>}, {transform_indices = @transform_1, window_bounds = array<i64: 1, 128>}, {transform_indices = @transform_2, window_bounds = array<i64: 1, 128>}]} {
    %c0 = arith.constant 0 : index
    %c0_0 = arith.constant 0 : index
    %0 = vector.load %arg1[%c0, %c0_0] : memref<9x128xf32, #tpu.memory_space<vmem>>, vector<9x128xf32>
    %cst = arith.constant dense<0xFF800000> : vector<128xf32>
    %1 = vector.multi_reduction <maximumf>, %0, %cst [0] : vector<9x128xf32> to vector<128xf32>
    %2 = vector.shape_cast %1 : vector<128xf32> to vector<1x128xf32>
    %3 = tpu.iota {dimensions = array<i32: 0>} : vector<9x1xi32>
    %4 = vector.broadcast %2 : vector<1x128xf32> to vector<9x128xf32>
    %5 = arith.cmpf oeq, %0, %4 : vector<9x128xf32>
    %c9_i32 = arith.constant 9 : i32
    %6 = vector.shape_cast %3 : vector<9x1xi32> to vector<9x1xi32>
    %7 = vector.broadcast %6 : vector<9x1xi32> to vector<9x128xi32>
    %8 = vector.broadcast %c9_i32 : i32 to vector<9x128xi32>
    %9 = arith.select %5, %7, %8 : vector<9x128xi1>, vector<9x128xi32>
    %cst_1 = arith.constant dense<2147483647> : vector<128xi32>
    %10 = vector.multi_reduction <minsi>, %9, %cst_1 [0] : vector<9x128xi32> to vector<128xi32>
    %11 = vector.shape_cast %10 : vector<128xi32> to vector<1x128xi32>
    %12 = arith.sitofp %11 : vector<1x128xi32> to vector<1x128xf32>
    %c0_2 = arith.constant 0 : index
    %c0_3 = arith.constant 0 : index
    %13 = vector.load %arg2[%c0_2, %c0_3] : memref<1x128xf32, #tpu.memory_space<vmem>>, vector<1x128xf32>
    %14 = arith.subf %12, %13 : vector<1x128xf32>
    %15 = arith.mulf %14, %14 : vector<1x128xf32>
    %16 = vector.shape_cast %15 : vector<1x128xf32> to vector<1x1x128xf32>
    %cst_4 = arith.constant dense<0.000000e+00> : vector<1xf32>
    %17 = vector.multi_reduction <add>, %16, %cst_4 [1, 2] : vector<1x1x128xf32> to vector<1xf32>
    %18 = vector.shape_cast %17 : vector<1xf32> to vector<1x1x1xf32>
    %19 = vector.extract %18[0, 0, 0] : f32 from vector<1x1x1xf32>
    %20 = tpu.iota {dimensions = array<i32: 1>} : vector<1x128xi32>
    %c0_i32 = arith.constant 0 : i32
    %21 = vector.broadcast %c0_i32 : i32 to vector<1x128xi32>
    %22 = arith.cmpi eq, %20, %21 : vector<1x128xi32>
    %cst_5 = arith.constant 0.000000e+00 : f32
    %23 = vector.broadcast %19 : f32 to vector<1x128xf32>
    %24 = vector.broadcast %cst_5 : f32 to vector<1x128xf32>
    %25 = arith.select %22, %23, %24 : vector<1x128xi1>, vector<1x128xf32>
    %c0_6 = arith.constant 0 : index
    %c0_7 = arith.constant 0 : index
    %26 = vector.load %arg3[%c0_6, %c0_7] : memref<1x128xf32, #tpu.memory_space<vmem>>, vector<1x128xf32>
    tpu.vector_store %arg3[%c0_6, %c0_7], %25 {strides = array<i32>} : memref<1x128xf32, #tpu.memory_space<vmem>>, vector<1x128xf32>,
    return
  }
  func.func @transform_0(%arg0: i32) -> (i32, i32) {
    %c0_i32 = arith.constant 0 : i32
    %c0_i32_0 = arith.constant 0 : i32
    return %c0_i32, %arg0 : i32, i32
  }
  func.func @transform_1(%arg0: i32) -> (i32, i32) {
    %c0_i32 = arith.constant 0 : i32
    %c0_i32_0 = arith.constant 0 : i32
    return %c0_i32, %arg0 : i32, i32
  }
  func.func @transform_2(%arg0: i32) -> (i32, i32) {
    %c0_i32 = arith.constant 0 : i32
    %c0_i32_0 = arith.constant 0 : i32
    return %c0_i32, %arg0 : i32, i32
  }
}

</mosaic_0001>

<llo_original>
// kernel: group_mse.1
$region0: #{group_mse.1}
  #allocation0 [shape = 'u32[]', space=smem, size = 0x4, offset = 0x4, fixed_abs, tag = 'smem constant byte address 0x4 - core index']
  #allocation1 [shape = 'u32[144,128]{1,0:T(1,128)}', space=vmem, size = 0x12000, scoped, tag = 'internal scratch']
  %s0 = inlined_call_operand.vmem [shape: f32[9,128], index: 0, kind: input, shape index: {}]
  %s1 = inlined_call_operand.vmem [shape: f32[1,128], index: 1, kind: input, shape index: {}]
  %s2 = inlined_call_operand.vmem [shape: f32[1,128], index: 2, kind: output, shape index: {}]
  %s3 = sld [smem:[#allocation0]]
  $region18: #{group_mse.1} parent=0
    _
  %s5 = ssub.s32 1, %s3
  %s6 = scalar_select 0, %s5, %s3
  // Predicated region
  $region2: #{group_mse.1} parent=0 // pred_check
    _
  $region3: #{group_mse.1} parent=0 // pred_check_branch
    %8 = sbr.rel (0) target = $region5
  $region4: #{group_mse.1} parent=0 // pred_region
    _
  $region5: #{group_mse.1} parent=0 // pred_fallthru
    _
  // Predicated region
  $region6: #{group_mse.1} parent=0 // pred_check
    _
  $region7: #{group_mse.1} parent=0 // pred_check_branch
    %10 = sbr.rel (0) target = $region9
  $region8: #{group_mse.1} parent=0 // pred_region
    _
  $region9: #{group_mse.1} parent=0 // pred_fallthru
    _
  %v11 = vld [vmem:[%s0] sm:$0xff]
  %v12 = vld [vmem:[%s0 + $0x8] sm:$0x1]
  %vm13 = vcmask 1040384
  %v14 = vsel %vm13, %v12, -inf
  %v15 = vmax.f32 %v11, %v14
  %v16 = vrot.slane %v15, 4
  %v17 = vmax.f32 %v15, %v16
  %v18 = vrot.slane %v17, 2
  %v19 = vmax.f32 %v17, %v18
  %v20 = vrot.slane %v19, 1
  %v21 = vmax.f32 %v19, %v20
  %v22 = vlaneseq
  %v23 = vshrl.u32 %v22, 7
  %v24 = vadd.s32 %v23, 8
  %vm25 = vcmp.eq.f32.partialorder %v11, %v21
  %vm26 = vcmp.eq.f32.partialorder %v12, %v21
  %v27 = vsel %vm25, %v23, 9
  %v28 = vsel %vm26, %v24, 9
  %v29 = vsel %vm13, %v28, 2147483647
  %vm30 = vcmp.lt.s32.totalorder %v27, %v29
  %v31 = vsel %vm30, %v27, %v29
  %v32 = vrot.slane %v31, 4
  %vm33 = vcmp.lt.s32.totalorder %v31, %v32
  %v34 = vsel %vm33, %v31, %v32
  %v35 = vrot.slane %v34, 2
  %vm36 = vcmp.lt.s32.totalorder %v34, %v35
  %v37 = vsel %vm36, %v34, %v35
  %v38 = vrot.slane %v37, 1
  %vm39 = vcmp.lt.s32.totalorder %v37, %v38
  %v40 = vsel %vm39, %v37, %v38
  %v41 = vcvt.s32.f32 %v40
  %v42 = vld [vmem:[%s1] sm:$0x1]
  %v43 = vsub.f32 %v41, %v42
  %v44 = vmul.f32 %v43, %v43
  %v45 = vsel %vm13, %v44, 0.0
  %46 = vadd.xlane.f32.xlu0 %v45
  %v47 = vpop.xlane.xlu0 %46
  %v48 = vrot.slane %v47, 4
  %v49 = vadd.f32 %v47, %v48
  %v50 = vrot.slane %v49, 2
  %v51 = vadd.f32 %v49, %v50
  %v52 = vrot.slane %v51, 1
  %v53 = vadd.f32 %v51, %v52
  %s54 = vtos %v53
  %v55 = vlaneseq
  %v56 = vand.u32 %v55, 127
  %vm57 = vcmp.eq.s32.totalorder %v56, 0
  %v58 = vstv %s54
  %v59 = vsel %vm57, %v58, 0.0
  %60 = vst [vmem:[%s2] sm:$0x1] %v59
  // Predicated region
  $region10: #{group_mse.1} parent=0 // pred_check
    _
  $region11: #{group_mse.1} parent=0 // pred_check_branch
    %62 = sbr.rel (0) target = $region13
  $region12: #{group_mse.1} parent=0 // pred_region
    _
  $region13: #{group_mse.1} parent=0 // pred_fallthru
    _
  // Predicated region
  $region14: #{group_mse.1} parent=0 // pred_check
    _
  $region15: #{group_mse.1} parent=0 // pred_check_branch
    %64 = sbr.rel (0) target = $region17
  $region16: #{group_mse.1} parent=0 // pred_region
    _
  $region17: #{group_mse.1} parent=0 // pred_fallthru
    _

</llo_original>
